<compile_context>
chip_gen: v5e
topology: v5e:2x2
jax: 0.10.0
libtpu: 0.0.40
codegen_flags: <defaults>
</compile_context>

<pallas_src>
import jax
import jax.numpy as jnp
from jax.experimental import pallas as pl
from jax.experimental.pallas import tpu as pltpu


def _round_up(n: int, m: int) -> int:
    return ((n + m - 1) // m) * m


def _bone_mlp_kernel(x_ref, w1_ref, b1_ref, w2_ref, b2_ref, w3_ref, b3_ref, o_ref):
    cdt = w1_ref.dtype                      # compute (MXU) dtype: f32 or bf16
    x = x_ref[...].astype(cdt)              # in-kernel cast (no wrapper HBM pass)

    # Layer 1: Linear(n_inp, 128) + ReLU.  MXU matmul, f32 accumulation.
    h1 = jnp.dot(x, w1_ref[...], preferred_element_type=jnp.float32)
    h1 = jnp.maximum(h1 + b1_ref[...], 0.0)

    # Layer 2: Linear(128, 64) + ReLU.  MXU matmul, f32 accumulation.
    h2 = jnp.dot(h1.astype(cdt), w2_ref[...], preferred_element_type=jnp.float32)
    h2 = jnp.maximum(h2 + b2_ref[...], 0.0)

    # Layer 3: Linear(64, 1), emitted lane-dense.  Contract w3 ([1, 64]) with
    # h2's feature dim (A @ B^T on the MXU, M=1) so the per-row scalars land
    # as a (1, tile_b) row with batch on lanes -> unmasked, wide stores.
    out = jax.lax.dot_general(
        w3_ref[...], h2.astype(cdt),
        dimension_numbers=(((1,), (1,)), ((), ())),
        preferred_element_type=jnp.float32)            # (1, tile_b)
    out = out + b3_ref[...]
    o_ref[...] = out.reshape(o_ref.shape).astype(o_ref.dtype)


def _pick_tile_b(B, n_inp, x_itemsize, w_itemsize, budget_bytes=20 * 1024 * 1024):
    """n_inp-, dtype- and VMEM-aware batch tile (multiple of 8, <= 4096 rows)."""
    b_pad8 = _round_up(max(B, 1), 8)
    # Resident weights (charged double-buffered) + f32 biases.
    fixed = 2 * (n_inp * 128 + 128 * 64 + 64) * w_itemsize + 2 * (128 + 64 + 1) * 4
    per_row = (
        2 * n_inp * x_itemsize      # double-buffered x tile
        + 2 * 4                     # double-buffered (1, tb) f32 output row
        + (128 + 64) * 4            # f32 h1 / h2 intermediates
        + n_inp * w_itemsize        # in-kernel cast copy of the x tile
    )
    avail = max(budget_bytes - fixed, 64 * 1024)
    cap = max(8, (avail // per_row) // 8 * 8)
    tb = min(4096, cap, b_pad8)
    # v7x megacore: with a big batch, keep >= 2 grid steps so the "parallel"
    # axis actually feeds both TensorCores instead of leaving one idle.
    if tb >= b_pad8 and b_pad8 >= 2048:
        tb = _round_up(pl.cdiv(b_pad8, 2), 8)
    return tb


def bone_model_forward(x, kernel_params, *, tile_b=None):
    """Fused forward pass. x: [B, n_inp] (f32 or bf16) -> [B, 1] float32."""
    w1, b1, w2, b2, w3, b3 = kernel_params
    B, n_inp = x.shape
    assert w1.shape == (n_inp, 128) and w3.shape == (1, 64) and b3.shape == (1, 1)

    if tile_b is None:
        tb = _pick_tile_b(B, n_inp, x.dtype.itemsize, w1.dtype.itemsize)
    else:
        # Round caller-supplied tiles up to sublane granularity (8) so the
        # BlockSpec never violates the (8, 128) tiling constraint.
        tb = min(_round_up(tile_b, 8), _round_up(B, 8))

    num_tiles = pl.cdiv(B, tb)
    b_pad = num_tiles * tb
    if b_pad != B:
        x = jnp.pad(x, ((0, b_pad - B), (0, 0)))   # deterministic full blocks

    def resident(a):
        # Constant index map -> block fetched once, stays resident in VMEM.
        zeros = (0,) * a.ndim
        return pl.BlockSpec(a.shape, lambda i: zeros)

    w_bytes = w1.dtype.itemsize
    cost = pl.CostEstimate(
        flops=2 * b_pad * (n_inp * 128 + 128 * 64 + 64),
        transcendentals=0,
        bytes_accessed=(b_pad * n_inp * x.dtype.itemsize          # x read
                        + b_pad * 4                               # out write
                        + (w1.size + w2.size + w3.size) * w_bytes
                        + (b1.size + b2.size + b3.size) * 4),
    )

    out = pl.pallas_call(
        _bone_mlp_kernel,
        out_shape=jax.ShapeDtypeStruct((num_tiles, 1, tb), jnp.float32),
        grid=(num_tiles,),
        in_specs=[
            pl.BlockSpec((tb, n_inp), lambda i: (i, 0)),   # x: batch-tiled
            resident(w1), resident(b1),
            resident(w2), resident(b2),
            resident(w3), resident(b3),
        ],
        # Lane-dense output: one (1, tb) row per grid step (batch on lanes).
        out_specs=pl.BlockSpec((1, 1, tb), lambda i: (i, 0, 0)),
        compiler_params=pltpu.CompilerParams(
            dimension_semantics=("parallel",),    # shard batch tiles across TCs
            vmem_limit_bytes=32 * 1024 * 1024,    # explicit; covers the budget
        ),
        cost_estimate=cost,
    )(x, w1, b1, w2, b2, w3, b3)

    return out.reshape(b_pad, 1)[:B]


def init_params(key, n_inp):
    """Deterministic synthetic parameters (shapes from BoneModel.__init__),
    stored as [in_features, out_features] with (1, out) bias rows."""
    ks = jax.random.split(key, 6)

    def lin(kw, kb, fan_in, fan_out):
        bound = 1.0 / (fan_in ** 0.5)
        w = jax.random.uniform(kw, (fan_in, fan_out), jnp.float32, -bound, bound)
        b = jax.random.uniform(kb, (1, fan_out), jnp.float32, -bound, bound)
        return w, b

    w1, b1 = lin(ks[0], ks[1], n_inp, 128)
    w2, b2 = lin(ks[2], ks[3], 128, 64)
    w3, b3 = lin(ks[4], ks[5], 64, 1)
    return (w1, b1, w2, b2, w3, b3)


def prepare_params(params, compute_dtype=jnp.float32):
    """One-time conversion to kernel layout (do this once, outside the hot
    loop).  compute_dtype=bf16 runs the MXU layers in bf16 (f32 accumulation)
    and lets callers stream bf16 x to halve HBM read traffic; f32 keeps full
    parity with the f32 PyTorch model (the kernel is not MXU-bound, so f32 is
    nearly free at these shapes)."""
    w1, b1, w2, b2, w3, b3 = params
    return (
        w1.astype(compute_dtype), b1.astype(jnp.float32),
        w2.astype(compute_dtype), b2.astype(jnp.float32),
        w3.reshape(1, -1).astype(compute_dtype),    # [1, 64] row for layer 3
        b3.reshape(1, 1).astype(jnp.float32),
    )


def reference_forward(x, params):
    """Pure-JAX f32 reference (matches the PyTorch forward with latent=None)."""
    w1, b1, w2, b2, w3, b3 = params
    h1 = jnp.maximum(x @ w1 + b1, 0.0)
    h2 = jnp.maximum(h1 @ w2 + b2, 0.0)
    return h2 @ w3 + b3


if __name__ == "__main__":
    key = jax.random.PRNGKey(0)
    k_x, k_p = jax.random.split(key)

    batch, n_inp = 8, 32
    x = jax.random.normal(k_x, (batch, n_inp), dtype=jnp.float32)
    params = init_params(k_p, n_inp)
    ref = reference_forward(x, params)

    # f32 path (parity with the f32 PyTorch model).
    out = bone_model_forward(x, prepare_params(params, jnp.float32))
    out = jax.block_until_ready(out)
    assert out.shape == (batch, 1)
    err = float(jnp.max(jnp.abs(out - ref)))
    assert jnp.allclose(out, ref, atol=2e-2, rtol=2e-2), f"f32 max abs err {err}"

    # bf16-streaming path: caller supplies bf16 x + bf16 weights to halve HBM
    # read traffic (biggest payoff on v5e); looser tolerance.
    out_bf = bone_model_forward(x.astype(jnp.bfloat16),
                                prepare_params(params, jnp.bfloat16))
    out_bf = jax.block_until_ready(out_bf)
    err_bf = float(jnp.max(jnp.abs(out_bf - ref)))
    assert jnp.allclose(out_bf, ref, atol=1e-1, rtol=1e-1), f"bf16 max abs err {err_bf}"

    print("KERNEL_OK")
</pallas_src>

<mosaic_0001>
module attributes {stable_mosaic.version = 11 : i64} {
  func.func @_bone_mlp_kernel(%arg0: i32, %arg1: memref<8x32xf32, #tpu.memory_space<vmem>>, %arg2: memref<32x128xf32, #tpu.memory_space<vmem>>, %arg3: memref<1x128xf32, #tpu.memory_space<vmem>>, %arg4: memref<128x64xf32, #tpu.memory_space<vmem>>, %arg5: memref<1x64xf32, #tpu.memory_space<vmem>>, %arg6: memref<1x64xf32, #tpu.memory_space<vmem>>, %arg7: memref<1x1xf32, #tpu.memory_space<vmem>>, %arg8: memref<1x1x8xf32, #tpu.memory_space<vmem>>) attributes {dimension_semantics = [#tpu.dimension_semantics<parallel>], iteration_bounds = array<i64: 1>, scalar_prefetch = 0 : i64, scratch_operands = 0 : i64, tpu.core_type = #tpu.core_type<tc>, window_params = [{transform_indices = @transform_0, window_bounds = array<i64: 8, 32>}, {pipeline_mode = #tpu.pipeline_mode<synchronous>, transform_indices = @transform_1, window_bounds = array<i64: 32, 128>}, {pipeline_mode = #tpu.pipeline_mode<synchronous>, transform_indices = @transform_2, window_bounds = array<i64: 1, 128>}, {pipeline_mode = #tpu.pipeline_mode<synchronous>, transform_indices = @transform_3, window_bounds = array<i64: 128, 64>}, {pipeline_mode = #tpu.pipeline_mode<synchronous>, transform_indices = @transform_4, window_bounds = array<i64: 1, 64>}, {pipeline_mode = #tpu.pipeline_mode<synchronous>, transform_indices = @transform_5, window_bounds = array<i64: 1, 64>}, {pipeline_mode = #tpu.pipeline_mode<synchronous>, transform_indices = @transform_6, window_bounds = array<i64: 1, 1>}, {transform_indices = @transform_7, window_bounds = array<i64: 1, 1, 8>}]} {
    %c0 = arith.constant 0 : index
    %c0_0 = arith.constant 0 : index
    %0 = vector.load %arg1[%c0, %c0_0] : memref<8x32xf32, #tpu.memory_space<vmem>>, vector<8x32xf32>
    %c0_1 = arith.constant 0 : index
    %c0_2 = arith.constant 0 : index
    %1 = vector.load %arg2[%c0_1, %c0_2] : memref<32x128xf32, #tpu.memory_space<vmem>>, vector<32x128xf32>
    %cst = arith.constant dense<0.000000e+00> : vector<8x128xf32>
    %2 = tpu.matmul %0, %1, %cst {dimension_numbers = #tpu.dot_dimension_numbers<[1], [0], [0], [1], [0, 0, 1, 1], [], []>} : vector<8x32xf32>, vector<32x128xf32>, vector<8x128xf32> -> vector<8x128xf32>
    %c0_3 = arith.constant 0 : index
    %c0_4 = arith.constant 0 : index
    %3 = vector.load %arg3[%c0_3, %c0_4] : memref<1x128xf32, #tpu.memory_space<vmem>>, vector<1x128xf32>
    %4 = vector.broadcast %3 : vector<1x128xf32> to vector<8x128xf32>
    %5 = arith.addf %2, %4 : vector<8x128xf32>
    %cst_5 = arith.constant 0.000000e+00 : f32
    %6 = vector.broadcast %cst_5 : f32 to vector<8x128xf32>
    %7 = arith.maximumf %5, %6 : vector<8x128xf32>
    %c0_6 = arith.constant 0 : index
    %c0_7 = arith.constant 0 : index
    %8 = vector.load %arg4[%c0_6, %c0_7] : memref<128x64xf32, #tpu.memory_space<vmem>>, vector<128x64xf32>
    %cst_8 = arith.constant dense<0.000000e+00> : vector<8x64xf32>
    %9 = tpu.matmul %7, %8, %cst_8 {dimension_numbers = #tpu.dot_dimension_numbers<[1], [0], [0], [1], [0, 0, 1, 1], [], []>} : vector<8x128xf32>, vector<128x64xf32>, vector<8x64xf32> -> vector<8x64xf32>
    %c0_9 = arith.constant 0 : index
    %c0_10 = arith.constant 0 : index
    %10 = vector.load %arg5[%c0_9, %c0_10] : memref<1x64xf32, #tpu.memory_space<vmem>>, vector<1x64xf32>
    %11 = vector.broadcast %10 : vector<1x64xf32> to vector<8x64xf32>
    %12 = arith.addf %9, %11 : vector<8x64xf32>
    %cst_11 = arith.constant 0.000000e+00 : f32
    %13 = vector.broadcast %cst_11 : f32 to vector<8x64xf32>
    %14 = arith.maximumf %12, %13 : vector<8x64xf32>
    %c0_12 = arith.constant 0 : index
    %c0_13 = arith.constant 0 : index
    %15 = vector.load %arg6[%c0_12, %c0_13] : memref<1x64xf32, #tpu.memory_space<vmem>>, vector<1x64xf32>
    %cst_14 = arith.constant dense<0.000000e+00> : vector<1x8xf32>
    %16 = tpu.matmul %15, %14, %cst_14 {dimension_numbers = #tpu.dot_dimension_numbers<[1], [1], [0], [0], [0, 0, 1, 0], [], []>} : vector<1x64xf32>, vector<8x64xf32>, vector<1x8xf32> -> vector<1x8xf32>
    %c0_15 = arith.constant 0 : index
    %c0_16 = arith.constant 0 : index
    %17 = vector.load %arg7[%c0_15, %c0_16] : memref<1x1xf32, #tpu.memory_space<vmem>>, vector<1x1xf32>
    %18 = vector.broadcast %17 : vector<1x1xf32> to vector<1x8xf32>
    %19 = arith.addf %16, %18 : vector<1x8xf32>
    %20 = vector.shape_cast %19 : vector<1x8xf32> to vector<1x1x8xf32>
    %c0_17 = arith.constant 0 : index
    %c0_18 = arith.constant 0 : index
    %c0_19 = arith.constant 0 : index
    %21 = vector.load %arg8[%c0_17, %c0_18, %c0_19] : memref<1x1x8xf32, #tpu.memory_space<vmem>>, vector<1x1x8xf32>
    tpu.vector_store %arg8[%c0_17, %c0_18, %c0_19], %20 {strides = array<i32>} : memref<1x1x8xf32, #tpu.memory_space<vmem>>, vector<1x1x8xf32>,
    return
  }
  func.func @transform_0(%arg0: i32) -> (i32, i32) {
    %c0_i32 = arith.constant 0 : i32
    %c0_i32_0 = arith.constant 0 : i32
    return %arg0, %c0_i32 : i32, i32
  }
  func.func @transform_1(%arg0: i32) -> (i32, i32) {
    %c0_i32 = arith.constant 0 : i32
    %c0_i32_0 = arith.constant 0 : i32
    %c0_i32_1 = arith.constant 0 : i32
    return %c0_i32, %c0_i32_0 : i32, i32
  }
  func.func @transform_2(%arg0: i32) -> (i32, i32) {
    %c0_i32 = arith.constant 0 : i32
    %c0_i32_0 = arith.constant 0 : i32
    %c0_i32_1 = arith.constant 0 : i32
    return %c0_i32, %c0_i32_0 : i32, i32
  }
  func.func @transform_3(%arg0: i32) -> (i32, i32) {
    %c0_i32 = arith.constant 0 : i32
    %c0_i32_0 = arith.constant 0 : i32
    %c0_i32_1 = arith.constant 0 : i32
    return %c0_i32, %c0_i32_0 : i32, i32
  }
  func.func @transform_4(%arg0: i32) -> (i32, i32) {
    %c0_i32 = arith.constant 0 : i32
    %c0_i32_0 = arith.constant 0 : i32
    %c0_i32_1 = arith.constant 0 : i32
    return %c0_i32, %c0_i32_0 : i32, i32
  }
  func.func @transform_5(%arg0: i32) -> (i32, i32) {
    %c0_i32 = arith.constant 0 : i32
    %c0_i32_0 = arith.constant 0 : i32
    %c0_i32_1 = arith.constant 0 : i32
    return %c0_i32, %c0_i32_0 : i32, i32
  }
  func.func @transform_6(%arg0: i32) -> (i32, i32) {
    %c0_i32 = arith.constant 0 : i32
    %c0_i32_0 = arith.constant 0 : i32
    %c0_i32_1 = arith.constant 0 : i32
    return %c0_i32, %c0_i32_0 : i32, i32
  }
  func.func @transform_7(%arg0: i32) -> (i32, i32, i32) {
    %c0_i32 = arith.constant 0 : i32
    %c0_i32_0 = arith.constant 0 : i32
    %c0_i32_1 = arith.constant 0 : i32
    return %arg0, %c0_i32, %c0_i32_0 : i32, i32, i32
  }
}

</mosaic_0001>

<llo_original>
// kernel: tpu_custom_call.1
$region0: #{tpu_custom_call.1}
  #allocation0 [shape = 'u32[]', space=smem, size = 0x4, offset = 0x4, fixed_abs, tag = 'smem constant byte address 0x4 - core index']
  #allocation1 [shape = 'u32[72,128]{1,0:T(1,128)}', space=vmem, size = 0x9000, scoped, tag = 'internal scratch']
  #allocation2 [shape = 'f32[1,1]{1,0:T(1,128)S(1)}', space=vmem, size = 0x200, scoped, tag = 'scoped memory for tpu_custom_call.1']
  %s0 = inlined_call_operand.vmem [shape: f32[8,32], index: 0, kind: input, shape index: {}]
  %s1 = inlined_call_operand.vmem [shape: f32[32,128], index: 1, kind: input, shape index: {}]
  %s2 = inlined_call_operand.vmem [shape: f32[1,128], index: 2, kind: input, shape index: {}]
  %s3 = inlined_call_operand.vmem [shape: f32[128,64], index: 3, kind: input, shape index: {}]
  %s4 = inlined_call_operand.vmem [shape: f32[1,64], index: 4, kind: input, shape index: {}]
  %s5 = inlined_call_operand.vmem [shape: f32[1,64], index: 5, kind: input, shape index: {}]
  %s6 = inlined_call_operand.<no memory space> [shape: f32[1,1], index: 6, kind: input, shape index: {}]
  %s7 = inlined_call_operand.hbm [shape: f32[1,1,8], index: 7, kind: output, shape index: {}]
  %s8 = sld [smem:[#allocation0]]
  $region38: #{tpu_custom_call.1} parent=0
    _
  %s10 = ssub.s32 1, %s8
  %s11 = scalar_select 0, %s10, %s8
  %v12 = vstv %s6
  %13 = vst [vmem:[#allocation2] sm:$0x1] %v12
  $region1: #{tpu_custom_call.1} parent=0
    #allocation3 [shape = 'u8[512]{0}', space=vmem, size = 0x400, scoped, tag = 'output window, operand 0, single buffered']
    #allocation4 [shape = 's32[1]{0}', space=sflag, size = 0x4, scoped, tag = 'scoped memory for tpu_custom_call.1']
    %14 = vsyncpa [#allocation4], 0
    // Predicated region
    $region2: #{tpu_custom_call.1} parent=1 // pred_check
      _
    $region3: #{tpu_custom_call.1} parent=1 // pred_check_branch
      %16 = sbr.rel (0) target = $region5
    $region4: #{tpu_custom_call.1} parent=1 // pred_region
      _
    $region5: #{tpu_custom_call.1} parent=1 // pred_fallthru
      _
    // Predicated region
    $region6: #{tpu_custom_call.1} parent=1 // pred_check
      _
    $region7: #{tpu_custom_call.1} parent=1 // pred_check_branch
      %18 = sbr.rel (0) target = $region9
    $region8: #{tpu_custom_call.1} parent=1 // pred_region
      _
    $region9: #{tpu_custom_call.1} parent=1 // pred_fallthru
      _
    // Predicated region
    $region10: #{tpu_custom_call.1} parent=1 // pred_check
      _
    $region11: #{tpu_custom_call.1} parent=1 // pred_check_branch
      %20 = sbr.rel (0) target = $region13
    $region12: #{tpu_custom_call.1} parent=1 // pred_region
      _
    $region13: #{tpu_custom_call.1} parent=1 // pred_fallthru
      _
    // Predicated region
    $region14: #{tpu_custom_call.1} parent=1 // pred_check
      _
    $region15: #{tpu_custom_call.1} parent=1 // pred_check_branch
      %22 = sbr.rel (0) target = $region17
    $region16: #{tpu_custom_call.1} parent=1 // pred_region
      _
    $region17: #{tpu_custom_call.1} parent=1 // pred_fallthru
      _
    // Predicated region
    $region18: #{tpu_custom_call.1} parent=1 // pred_check
      _
    $region19: #{tpu_custom_call.1} parent=1 // pred_check_branch
      %24 = sbr.rel (0) target = $region21
    $region20: #{tpu_custom_call.1} parent=1 // pred_region
      _
    $region21: #{tpu_custom_call.1} parent=1 // pred_fallthru
      _
    // Predicated region
    $region22: #{tpu_custom_call.1} parent=1 // pred_check
      _
    $region23: #{tpu_custom_call.1} parent=1 // pred_check_branch
      %26 = sbr.rel (0) target = $region25
    $region24: #{tpu_custom_call.1} parent=1 // pred_region
      _
    $region25: #{tpu_custom_call.1} parent=1 // pred_fallthru
      _
    // Predicated region
    $region26: #{tpu_custom_call.1} parent=1 // pred_check
      _
    $region27: #{tpu_custom_call.1} parent=1 // pred_check_branch
      %28 = sbr.rel (0) target = $region29
    $region28: #{tpu_custom_call.1} parent=1 // pred_region
      _
    $region29: #{tpu_custom_call.1} parent=1 // pred_fallthru
      _
    %v29 = vld [vmem:[%s0] sm:$0xff]
    %v30 = vld [vmem:[%s1] sm:$0xff]
    %v31 = vld [vmem:[%s1 + $0x8] sm:$0xff]
    %v32 = vld [vmem:[%s1 + $0x10] sm:$0xff]
    %v33 = vld [vmem:[%s1 + $0x18] sm:$0xff]
    %v34 = vld [vmem:[%s2] sm:$0x1]
    %v36 = vperm.slane %v34, 0
    %vm38 = vcmask 261120
    %v40 = vsel %vm38, %v29, 0
    %42 = vmatpush.msra.mxu0 0.0
    %43 = vmatpush.msra.mxu0 0.0
    %44 = vmatpush.msra.mxu0 0.0
    %45 = vmatpush.msra.mxu0 0.0
    %46 = vmatpush.msra.mxu0 0.0
    %47 = vmatpush.msra.mxu0 0.0
    %48 = vmatpush.msra.mxu0 0.0
    %49 = vmatpush.msra.mxu0 0.0
    %50 = vmatpush.msra.mxu0 0.0
    %51 = vmatpush.msra.mxu0 0.0
    %52 = vmatpush.msra.mxu0 0.0
    %53 = vmatpush.msra.mxu0 0.0
    %54 = vmatpush.msra.mxu0 %v33
    %55 = vmatpush.msra.mxu0 %v32
    %56 = vmatpush.msra.mxu0 %v31
    %57 = vmatpush.msra.mxu0 %v30
    %58 = vmatmul.f32.gmra.mxu0 %v40
    %v59 = vpop.f32.mrf.mxu0
    %v60 = vadd.f32 %v36, %v59
    %61 = vdwg.mxu0
    %v62 = vmax.f32 %v60, 0.0
    %v63 = vld [vmem:[%s3] sm:$0xff]
    %v64 = vld [vmem:[%s3 + $0x8] sm:$0xff]
    %v65 = vld [vmem:[%s3 + $0x10] sm:$0xff]
    %v66 = vld [vmem:[%s3 + $0x18] sm:$0xff]
    %v67 = vld [vmem:[%s3 + $0x20] sm:$0xff]
    %v68 = vld [vmem:[%s3 + $0x28] sm:$0xff]
    %v69 = vld [vmem:[%s3 + $0x30] sm:$0xff]
    %v70 = vld [vmem:[%s3 + $0x38] sm:$0xff]
    %v71 = vld [vmem:[%s3 + $0x40] sm:$0xff]
    %v72 = vld [vmem:[%s3 + $0x48] sm:$0xff]
    %v73 = vld [vmem:[%s3 + $0x50] sm:$0xff]
    %v74 = vld [vmem:[%s3 + $0x58] sm:$0xff]
    %v75 = vld [vmem:[%s3 + $0x60] sm:$0xff]
    %v76 = vld [vmem:[%s3 + $0x68] sm:$0xff]
    %v77 = vld [vmem:[%s3 + $0x70] sm:$0xff]
    %v78 = vld [vmem:[%s3 + $0x78] sm:$0xff]
    %v79 = vld [vmem:[%s4] sm:$0x1]
    %v81 = vperm.slane %v79, 0
    %83 = vmatpush.msra.mxu0 %v78
    %84 = vmatpush.msra.mxu0 %v77
    %85 = vmatpush.msra.mxu0 %v76
    %86 = vmatpush.msra.mxu0 %v75
    %87 = vmatpush.msra.mxu0 %v74
    %88 = vmatpush.msra.mxu0 %v73
    %89 = vmatpush.msra.mxu0 %v72
    %90 = vmatpush.msra.mxu0 %v71
    %91 = vmatpush.msra.mxu0 %v70
    %92 = vmatpush.msra.mxu0 %v69
    %93 = vmatpush.msra.mxu0 %v68
    %94 = vmatpush.msra.mxu0 %v67
    %95 = vmatpush.msra.mxu0 %v66
    %96 = vmatpush.msra.mxu0 %v65
    %97 = vmatpush.msra.mxu0 %v64
    %98 = vmatpush.msra.mxu0 %v63
    %99 = vmatmul.f32.gmra.mxu0 %v62
    %v100 = vpop.f32.mrf.mxu0
    %v101 = vadd.f32 %v81, %v100
    %102 = vdwg.mxu0
    %v103 = vmax.f32 %v101, 0.0
    %v104 = vld [vmem:[%s5] sm:$0x1]
    %v105 = vld [vmem:[#allocation2] sm:$0x1]
    %107 = vset.pattern.permute.xlu0 0
    %108 = vperm.xlu0 %107, %v105
    %v109 = vpop.permute.xlu0 %108
    %v111 = vperm.slane %v109, 0
    %vm112 = vcmask 523264
    %v114 = vsel %vm112, %v104, 0
    %v117 = vsel %vm112, %v103, 0
    %119 = vmatpush.xpose.msra.mxu0 0.0
    %120 = vmatpush.xpose.msra.mxu0 0.0
    %121 = vmatpush.xpose.msra.mxu0 0.0
    %122 = vmatpush.xpose.msra.mxu0 0.0
    %123 = vmatpush.xpose.msra.mxu0 0.0
    %124 = vmatpush.xpose.msra.mxu0 0.0
    %125 = vmatpush.xpose.msra.mxu0 0.0
    %126 = vmatpush.xpose.msra.mxu0 0.0
    %127 = vmatpush.xpose.msra.mxu0 0.0
    %128 = vmatpush.xpose.msra.mxu0 0.0
    %129 = vmatpush.xpose.msra.mxu0 0.0
    %130 = vmatpush.xpose.msra.mxu0 0.0
    %131 = vmatpush.xpose.msra.mxu0 0.0
    %132 = vmatpush.xpose.msra.mxu0 0.0
    %133 = vmatpush.xpose.msra.mxu0 0.0
    %134 = vmatpush.xpose.msra.mxu0 %v117
    %135 = vmatmul.f32.gmra.mxu0 %v114
    %v136 = vpop.f32.mrf.mxu0
    %v137 = vadd.f32 %v111, %v136
    %138 = vdwg.mxu0
    %vm139 = vcmask 57344
    %140 = vst.msk [vmem:[#allocation3] sm:$0x1] %vm139, %v137
    // Predicated region
    $region30: #{tpu_custom_call.1} parent=1 // pred_check
      _
    $region31: #{tpu_custom_call.1} parent=1 // pred_check_branch
      %142 = sbr.rel (0) target = $region33
    $region32: #{tpu_custom_call.1} parent=1 // pred_region
      %144 = vsyncadd [#allocation4], 0
      %s146 = sshll.u32 [#allocation3], 4
      %s147 = int_to_ptr.vmem [resolvable:$true] %s146
      %s148 = sshll.u32 %s7, 4
      %s149 = int_to_ptr.hbm [resolvable:$true] %s148
      %151 = dma.vmem_to_hbm [thread:$0]  %s147, 16, %s149, [#allocation4]
    $region33: #{tpu_custom_call.1} parent=1 // pred_fallthru
      _
    // Predicated region
    $region34: #{tpu_custom_call.1} parent=1 // pred_check
      _
    $region35: #{tpu_custom_call.1} parent=1 // pred_check_branch
      %153 = sbr.rel (0) target = $region37
    $region36: #{tpu_custom_call.1} parent=1 // pred_region
      %155 = dma.done [#allocation4], 16
    $region37: #{tpu_custom_call.1} parent=1 // pred_fallthru
      _
    %156 = vsyncpa [#allocation4], 1

</llo_original>
